<compile_context>
chip_gen: v5e
topology: v5e:2x2
jax: 0.10.0
libtpu: 0.0.40
codegen_flags: <defaults>
</compile_context>

<pallas_src>
import functools
import math

import jax
import jax.numpy as jnp
from jax import lax
from jax.experimental import pallas as pl
from jax.experimental.pallas import tpu as pltpu


_LOG_LO = math.log(1e-4)          # log(clip lower bound)
_LOG_HI = math.log(1.0 - 1e-4)    # log(clip upper bound)


# ----------------------------------------------------------------------------
# small helpers
# ----------------------------------------------------------------------------

def _vspec():
    return pl.BlockSpec(memory_space=pltpu.MemorySpace.VMEM)


def _dot_t(a, b):
    # a @ b.T without materializing a transpose (contract last dim with last dim)
    return lax.dot_general(a, b, (((1,), (1,)), ((), ())),
                           preferred_element_type=jnp.float32)


def _softplus(x):
    # numerically stable softplus; inputs here are bounded (|4s| <= 4)
    return jnp.maximum(x, 0.0) + jnp.log(1.0 + jnp.exp(-jnp.abs(x)))


def _pad_lane(x, mult=128):
    """Zero-pad the last (lane) dim up to a multiple of `mult`."""
    pad = (-x.shape[-1]) % mult
    if pad == 0:
        return x
    widths = [(0, 0)] * (x.ndim - 1) + [(0, pad)]
    return jnp.pad(x, widths)


def _pad_rows(x, mult=128):
    """Zero-pad the leading dim up to a multiple of `mult`."""
    pad = (-x.shape[0]) % mult
    if pad == 0:
        return x
    return jnp.pad(x, [(0, pad)] + [(0, 0)] * (x.ndim - 1))


def segment_sum(data, seg_ids, num_segments):
    # myscattersum equivalent for sorted/contiguous batch indices; implemented
    # with scatter-add to stay independent of jax.ops API churn.
    out_shape = (num_segments,) + data.shape[1:]
    return jnp.zeros(out_shape, data.dtype).at[seg_ids].add(data)


# ----------------------------------------------------------------------------
# Pallas kernels (full-array blocks, no grid: everything fits VMEM)
# ----------------------------------------------------------------------------

def beta_kernel(tv_ref, wvb_ref, beta_ref):
    # topic_vec: (K, ni); word_vec_beta: (V, ni)  ->  beta: (K, V) row softmax
    logits = _dot_t(tv_ref[...], wvb_ref[...])                 # (K, V)
    m = jnp.max(logits, axis=-1, keepdims=True)
    e = jnp.exp(logits - m)
    s = jnp.sum(e, axis=-1, keepdims=True)                     # s >= 1
    beta_ref[...] = e * pl.reciprocal(s, approx=True)


def fused_struct_kernel(tv_ref, tev_ref, wha_ref, whb_ref, wta_ref, wtb_ref,
                        phiT_ref, srcT_ref, dstT_ref, bphT_ref,
                        betagT_ref, thetagT_ref, valid_ref,
                        edge_out_ref, node_out_ref):
    # ---- W path (get_W): head/tail projection, L2 norm, log W / log(1-W) ----
    tv = tv_ref[...]                                           # (K, ni)
    tev = tev_ref[...]                                         # (K, 2ni)
    head = _dot_t(tv, wha_ref[...]) + _dot_t(tev, whb_ref[...])  # (K, 32)
    tail = _dot_t(tv, wta_ref[...]) + _dot_t(tev, wtb_ref[...])  # (K, 32)
    head = head / jnp.maximum(
        jnp.sqrt(jnp.sum(head * head, axis=-1, keepdims=True)), 1e-10)
    tail = tail / jnp.maximum(
        jnp.sqrt(jnp.sum(tail * tail, axis=-1, keepdims=True)), 1e-10)
    # sT = (head @ tail.T).T  computed directly
    sT = _dot_t(tail, head)                                    # (K, K)
    # log(clip(sigmoid(4s), 1e-4, 1-1e-4)) = clip(-softplus(-4s), log lo, log hi)
    logPW_T = jnp.clip(-_softplus(-4.0 * sT), _LOG_LO, _LOG_HI)
    logNW_T = jnp.clip(-_softplus(4.0 * sT), _LOG_LO, _LOG_HI)

    phiT = phiT_ref[...]                                       # (K, Npad)
    srcT = srcT_ref[...]                                       # (K, Epad)
    dstT = dstT_ref[...]                                       # (K, Epad)

    # ---- positive-edge term:  p_edge[e] = (phi_src @ logPW) . phi_dst -------
    tpT = jnp.dot(logPW_T, srcT, preferred_element_type=jnp.float32)
    p_edge = jnp.sum(tpT * dstT, axis=0, keepdims=True)        # (1, Epad)

    # ---- per-edge negative correction (masked entries of neg_mask) ----------
    tneT = jnp.dot(logNW_T, srcT, preferred_element_type=jnp.float32)
    corr = jnp.sum(tneT * dstT, axis=0, keepdims=True) * valid_ref[...]

    # ---- negative term without the (N,N) mask: t_i.(batch_sum - phi_i) ------
    tT = jnp.dot(logNW_T, phiT, preferred_element_type=jnp.float32)
    n_partial = jnp.sum(tT * (bphT_ref[...] - phiT), axis=0, keepdims=True)

    # ---- per-node recon_word and KL2 ----------------------------------------
    rw = jnp.sum(phiT * jnp.log(betagT_ref[...] + 1e-6), axis=0, keepdims=True)
    kl2 = jnp.sum(phiT * jnp.log(phiT / (thetagT_ref[...] + 1e-10) + 1e-10),
                  axis=0, keepdims=True)

    edge_out_ref[...] = jnp.concatenate([p_edge, corr], axis=0)          # (2, Epad)
    node_out_ref[...] = jnp.concatenate([n_partial, rw, kl2], axis=0)    # (3, Npad)


def beta_edge_kernel(tev_ref, edgevec_ref, wplus_ref, out_ref):
    # topic_edge_vec: (K, 2ni); edge_vec: (Ep_pad, 2ni); wplus: (K, Ep_pad)
    # wplus = beta_edge_w + 1e-20 for real columns, exactly 0 for padding.
    logits = _dot_t(tev_ref[...], edgevec_ref[...])            # (K, Ep_pad)
    wplus = wplus_ref[...]
    lw = logits + jnp.log(wplus)                               # pad -> -inf
    m = jnp.max(lw, axis=-1, keepdims=True)
    # real columns satisfy logits - m <= -log(1e-20) < 60, so the clamp only
    # protects padded columns from overflow (their weight is exactly 0).
    e0 = jnp.exp(jnp.minimum(logits - m, 60.0))
    s = jnp.sum(e0 * wplus, axis=-1, keepdims=True)            # s >= 1
    out_ref[...] = e0 * pl.reciprocal(s, approx=True)


# ----------------------------------------------------------------------------
# Pallas wrappers
# ----------------------------------------------------------------------------

def pallas_beta(topic_vec, word_vec_beta):
    K = topic_vec.shape[0]
    V = word_vec_beta.shape[0]
    return pl.pallas_call(
        beta_kernel,
        out_shape=jax.ShapeDtypeStruct((K, V), jnp.float32),
        in_specs=[_vspec(), _vspec()],
        out_specs=_vspec(),
    )(topic_vec, word_vec_beta)


def pallas_struct_node(topic_vec, topic_edge_vec, topic_linear_w,
                       phiT, srcT, dstT, bphT, betagT, thetagT, valid):
    K, ni = topic_vec.shape
    half = topic_linear_w.shape[0] // 2
    # pre-slice the linear weight host-side so the kernel never slices at a
    # non-128 lane offset
    wh, wt = topic_linear_w[:half], topic_linear_w[half:]
    wh_a, wh_b = wh[:, :ni], wh[:, ni:]
    wt_a, wt_b = wt[:, :ni], wt[:, ni:]

    # lane-pad N/E to multiples of 128 (zero rows contribute exactly 0)
    phiT, bphT, betagT, thetagT = map(_pad_lane, (phiT, bphT, betagT, thetagT))
    srcT, dstT, valid = map(_pad_lane, (srcT, dstT, valid))
    Npad = phiT.shape[1]
    Epad = srcT.shape[1]

    edge_out, node_out = pl.pallas_call(
        fused_struct_kernel,
        out_shape=(jax.ShapeDtypeStruct((2, Epad), jnp.float32),
                   jax.ShapeDtypeStruct((3, Npad), jnp.float32)),
        in_specs=[_vspec()] * 13,
        out_specs=(_vspec(), _vspec()),
    )(topic_vec, topic_edge_vec, wh_a, wh_b, wt_a, wt_b,
      phiT, srcT, dstT, bphT, betagT, thetagT, valid)
    return edge_out, node_out


def pallas_beta_edge(topic_edge_vec, edge_vec, beta_edge_w):
    K = topic_edge_vec.shape[0]
    Ep1 = edge_vec.shape[0]
    edge_vec_p = _pad_rows(edge_vec)                 # (Ep_pad, 2ni)
    wplus = _pad_lane(beta_edge_w + 1e-20)           # (K, Ep_pad), pad cols == 0
    Ep_pad = edge_vec_p.shape[0]
    out = pl.pallas_call(
        beta_edge_kernel,
        out_shape=jax.ShapeDtypeStruct((K, Ep_pad), jnp.float32),
        in_specs=[_vspec()] * 3,
        out_specs=_vspec(),
    )(topic_edge_vec, edge_vec_p, wplus)
    return out[:, :Ep1]


# ----------------------------------------------------------------------------
# Glue (encoder stub, forward)
# ----------------------------------------------------------------------------

# TODO(synk): GNNDir2encoder / GNNGaussianencoder source is not part of the
# provided module; substitute a minimal Gaussian encoder with the same
# interface (returns (param, phi) with KL_loss / reparameterize semantics).
def encoder_forward(params, idx_x, idx_w, x_batch, size, key):
    h = params['word_vec'][idx_x]                                 # (N, ni)
    wsum = segment_sum(idx_w, x_batch, size)                      # (B,)
    doc = segment_sum(h * idx_w[:, None], x_batch, size)
    doc = doc / (wsum[:, None] + 1e-10)                           # (B, ni)
    mu = doc @ params['enc_w_mu']                                 # (B, K)
    logvar = doc @ params['enc_w_lv']                             # (B, K)
    phi = jax.nn.softmax(h @ params['enc_w_phi'], axis=-1)        # (N, K)
    KL1 = 0.5 * jnp.sum(mu * mu + jnp.exp(logvar) - logvar - 1.0, axis=-1)
    eps = jax.random.normal(key, mu.shape)
    theta = jax.nn.softmax(mu + jnp.exp(0.5 * logvar) * eps, axis=-1)
    return (mu, logvar), phi, KL1, theta


def gdgnn_forward(params, data, args, key):
    idx_x = data['x']
    x_batch = data['x_batch']
    idx_w = data['x_w']
    edge_w = data['edge_w']
    edge_id = data['edge_id']
    edge_id_batch = data['edge_id_batch']
    edge_index = data['edge_index']
    whole_edge = params['whole_edge']

    N = idx_x.shape[0]
    E = edge_index.shape[1]
    K = args['num_topic']
    B = args['batch_size']
    maskrate = 1.0 / K

    k_enc, k_gumbel = jax.random.split(key)
    (mu, logvar), phi, KL1, theta = encoder_forward(
        params, idx_x, idx_w, x_batch, B, k_enc)

    # ------------------------------------------------------------------ beta
    beta = pallas_beta(params['topic_vec'], params['word_vec_beta'])  # (K, V)

    # -------------------------------------------- fused structure/node kernel
    src, dst = edge_index[0], edge_index[1]
    # exact semantics of neg_mask[src, dst] = 0 (idempotent, same-batch,
    # non-diagonal entries only): count each distinct masked pair once.
    pair = src * N + dst
    order = jnp.argsort(pair)
    sp = pair[order]
    dup_sorted = jnp.concatenate(
        [jnp.zeros((1,), dtype=bool), sp[1:] == sp[:-1]])
    first = jnp.zeros((E,), dtype=bool).at[order].set(jnp.logical_not(dup_sorted))
    valid = ((x_batch[src] == x_batch[dst]) & (src != dst) & first
             ).astype(jnp.float32)                                 # (E,)

    phiT = phi.T                                                   # (K, N)
    srcT = phiT[:, src]                                            # (K, E)
    dstT = phiT[:, dst]                                            # (K, E)
    bphT = segment_sum(phi, x_batch, B).T[:, x_batch]              # (K, N)
    betagT = beta[:, idx_x]                                        # (K, N)
    thetagT = theta.T[:, x_batch]                                  # (K, N)

    edge_out, node_out = pallas_struct_node(
        params['topic_vec'], params['topic_edge_vec'], params['topic_linear_w'],
        phiT, srcT, dstT, bphT, betagT, thetagT, valid[None, :])

    p_edge_e = edge_out[0, :E]
    corr_e = edge_out[1, :E]
    n_partial_n = node_out[0, :N]
    rw_n = node_out[1, :N]
    kl2_n = node_out[2, :N]

    recon_word = -segment_sum(idx_w * rw_n, x_batch, B)            # (B,)
    KL2 = segment_sum(idx_w * kl2_n, x_batch, B)                   # (B,)

    p_edge = segment_sum(p_edge_e, edge_id_batch, B)               # (B,)
    n_edge1 = (segment_sum(n_partial_n, x_batch, B)
               - segment_sum(corr_e, x_batch[src], B))             # (B,)
    NP = segment_sum(jnp.ones((E,), jnp.float32), edge_id_batch, B)
    cnt = segment_sum(jnp.ones((N,), jnp.float32), x_batch, B)
    NN = cnt * (cnt - 1.0) - segment_sum(valid, x_batch[src], B)
    recon_structure = -(p_edge + n_edge1 / (NN + 1e-6) * NP)

    # ---------------------------------------------------------- seed loss
    seed_loss = 0.0
    for k, ids in args['seed_dict'].items():
        if ids:
            p_w = beta[k, jnp.asarray(ids)]
            seed_loss += -jnp.mean(jnp.log(jnp.maximum(p_w, 1e-8)))
    seed_loss = args['seed_weight'] * seed_loss

    # ----------------------------------------------- relaxed one-hot samples
    S = args['num_samp']
    u = jax.random.uniform(k_gumbel, (S, N, K), minval=1e-10, maxval=1.0)
    gumbel = -jnp.log(-jnp.log(u))
    z_soft = jax.nn.softmax((jnp.log(phi + 1e-20) + gumbel) / args['temp'],
                            axis=-1)
    # hard_z: forward value is the one-hot
    z = jax.nn.one_hot(jnp.argmax(z_soft, axis=-1), K, dtype=jnp.float32)

    # -------------------------------------------------------- beta_edge path
    beta_ew = beta[:, whole_edge]                                  # (K, 2, Ew)
    beta_ew = jnp.prod(beta_ew, axis=1)                            # (K, Ew)
    beta_newd = 1.0 - jnp.sum(beta_ew, axis=-1)                    # (K,)
    beta_edge_w = jnp.concatenate([beta_newd[:, None], beta_ew], axis=1)
    ev = params['word_vec_beta'][whole_edge]                       # (2, Ew, ni)
    edge_vec = jnp.concatenate([ev[0], ev[1]], axis=-1)            # (Ew, 2ni)
    edge_vec = jnp.concatenate([params['noedge_vec'], edge_vec], axis=0)
    beta_edge = pallas_beta_edge(params['topic_edge_vec'], edge_vec,
                                 beta_edge_w)                      # (K, Ew+1)

    beta_edge_s = beta_edge[:, edge_id].T                          # (E, K)
    z_edge_w = z[:, edge_index, :]                                 # (S, 2, E, K)
    z_edge_w = z_edge_w * (z_edge_w > maskrate)
    z_edge_w = edge_w[None, :, None] * jnp.prod(z_edge_w, axis=1)  # (S, E, K)
    bes = beta_edge_s[None, :, :] * z_edge_w                       # (S, E, K)

    bes_b = jnp.zeros((S, B, K), jnp.float32).at[:, edge_id_batch, :].add(bes)
    zew_b = jnp.zeros((S, B, K), jnp.float32).at[:, edge_id_batch, :].add(z_edge_w)
    recon_edge = -jnp.mean(
        jnp.sum(jnp.log(jnp.maximum(bes_b, 1e-10) / jnp.maximum(zew_b, 1e-10)),
                axis=-1), axis=0)                                  # (B,)

    # eval-mode branch of the loss
    loss = recon_edge + recon_word + KL1 + KL2 + recon_structure + seed_loss

    return {
        'loss': jnp.mean(loss),
        'recon_word': jnp.mean(recon_word),
        'recon_edgew': jnp.mean(recon_edge),
        'recon_structure': jnp.mean(recon_structure),
        'p_edge': jnp.mean(p_edge),
        'KL1': jnp.mean(KL1),
        'KL2': jnp.mean(KL2),
    }


# ----------------------------------------------------------------------------
# Deterministic parameter / data construction
# ----------------------------------------------------------------------------

def build_params(key, vocab_size, ni, num_topic, e_whole, seed_dict):
    ks = jax.random.split(key, 10)
    word_vec = 0.01 * jax.random.normal(ks[0], (vocab_size, ni), jnp.float32)
    word_vec_beta = 0.01 * jax.random.normal(ks[1], (vocab_size, ni),
                                             jnp.float32)
    topic_edge_vec = jax.random.normal(ks[2], (num_topic, 2 * ni), jnp.float32)
    noedge_vec = 0.01 * jax.random.normal(ks[3], (1, 2 * ni), jnp.float32)
    topic_linear_w = 0.01 * jax.random.normal(ks[4], (64, 3 * ni), jnp.float32)
    # topic_vec initialised from seed words (as in __init__)
    tkeys = jax.random.split(ks[5], num_topic)
    rows = []
    for k in range(num_topic):
        ids = seed_dict.get(k, [])
        if ids:
            rows.append(jnp.mean(word_vec_beta[jnp.asarray(ids)], axis=0))
        else:
            rows.append(0.01 * jax.random.normal(tkeys[k], (ni,), jnp.float32))
    topic_vec = jnp.stack(rows, axis=0)
    whole_edge = jax.random.randint(ks[6], (2, e_whole), 0, vocab_size)
    # encoder stub parameters
    enc_w_mu = 0.1 * jax.random.normal(ks[7], (ni, num_topic), jnp.float32)
    enc_w_lv = 0.1 * jax.random.normal(ks[8], (ni, num_topic), jnp.float32)
    enc_w_phi = 0.1 * jax.random.normal(ks[9], (ni, num_topic), jnp.float32)
    return dict(word_vec=word_vec, word_vec_beta=word_vec_beta,
                topic_vec=topic_vec, topic_edge_vec=topic_edge_vec,
                noedge_vec=noedge_vec, topic_linear_w=topic_linear_w,
                whole_edge=whole_edge, enc_w_mu=enc_w_mu, enc_w_lv=enc_w_lv,
                enc_w_phi=enc_w_phi)


def build_data(key, vocab_size, e_whole):
    ks = jax.random.split(key, 8)
    N = 16                       # 8 nodes per document, 2 documents
    E = 12                       # 6 edges per document
    idx_x = jax.random.randint(ks[0], (N,), 0, vocab_size)
    x_batch = jnp.array([0] * 8 + [1] * 8, dtype=jnp.int32)
    idx_w = jax.random.uniform(ks[1], (N,), minval=0.5, maxval=1.5)
    ei0 = jax.random.randint(ks[2], (2, 6), 0, 8)
    ei1 = jax.random.randint(ks[3], (2, 6), 8, 16)
    edge_index = jnp.concatenate([ei0, ei1], axis=1)
    edge_id = jax.random.randint(ks[4], (E,), 1, e_whole + 1)
    edge_id_batch = jnp.array([0] * 6 + [1] * 6, dtype=jnp.int32)
    edge_w = jax.random.uniform(ks[5], (E,), minval=0.5, maxval=2.0)
    return dict(x=idx_x, x_batch=x_batch, x_w=idx_w, edge_w=edge_w,
                edge_id=edge_id, edge_id_batch=edge_id_batch,
                edge_index=edge_index)


if __name__ == "__main__":
    vocab_size = 128
    ni = 32
    num_topic = 8
    e_whole = 16
    seed_dict = {0: [1, 2, 3], 1: [5, 6, 7]}
    args = dict(num_topic=num_topic, batch_size=2, num_samp=2, temp=0.5,
                seed_weight=1.0, seed_dict=seed_dict)

    root = jax.random.PRNGKey(0)
    k_param, k_data, k_fwd = jax.random.split(root, 3)
    params = build_params(k_param, vocab_size, ni, num_topic, e_whole,
                          seed_dict)
    data = build_data(k_data, vocab_size, e_whole)

    run = jax.jit(lambda p, d, k: gdgnn_forward(p, d, args, k))
    outputs = run(params, data, k_fwd)
    jax.block_until_ready(outputs['loss'])
    assert bool(jnp.isfinite(outputs['loss']))
    print("KERNEL_OK")
</pallas_src>

<mosaic_0001>
module attributes {stable_mosaic.version = 11 : i64} {
  func.func @beta_kernel(%arg0: memref<8x32xf32, #tpu.memory_space<vmem>>, %arg1: memref<128x32xf32, #tpu.memory_space<vmem>>, %arg2: memref<8x128xf32, #tpu.memory_space<vmem>>) attributes {dimension_semantics = [], scalar_prefetch = 0 : i64, scratch_operands = 0 : i64, tpu.core_type = #tpu.core_type<tc>} {
    %c0 = arith.constant 0 : index
    %c0_0 = arith.constant 0 : index
    %0 = vector.load %arg0[%c0, %c0_0] : memref<8x32xf32, #tpu.memory_space<vmem>>, vector<8x32xf32>
    %c0_1 = arith.constant 0 : index
    %c0_2 = arith.constant 0 : index
    %1 = vector.load %arg1[%c0_1, %c0_2] : memref<128x32xf32, #tpu.memory_space<vmem>>, vector<128x32xf32>
    %cst = arith.constant dense<0.000000e+00> : vector<8x128xf32>
    %2 = tpu.matmul %0, %1, %cst {dimension_numbers = #tpu.dot_dimension_numbers<[1], [1], [0], [0], [0, 0, 1, 0], [], []>} : vector<8x32xf32>, vector<128x32xf32>, vector<8x128xf32> -> vector<8x128xf32>
    %cst_3 = arith.constant dense<0xFF800000> : vector<8xf32>
    %3 = vector.multi_reduction <maximumf>, %2, %cst_3 [1] : vector<8x128xf32> to vector<8xf32>
    %4 = vector.shape_cast %3 : vector<8xf32> to vector<8x1xf32>
    %5 = vector.broadcast %4 : vector<8x1xf32> to vector<8x128xf32>
    %6 = arith.subf %2, %5 : vector<8x128xf32>
    %7 = math.exp %6 : vector<8x128xf32>
    %cst_4 = arith.constant dense<0.000000e+00> : vector<8xf32>
    %8 = vector.multi_reduction <add>, %7, %cst_4 [1] : vector<8x128xf32> to vector<8xf32>
    %9 = vector.shape_cast %8 : vector<8xf32> to vector<8x1xf32>
    %10 = tpu.reciprocal %9 {approx = true} : vector<8x1xf32> -> vector<8x1xf32>
    %11 = vector.broadcast %10 : vector<8x1xf32> to vector<8x128xf32>
    %12 = arith.mulf %7, %11 : vector<8x128xf32>
    %c0_5 = arith.constant 0 : index
    %c0_6 = arith.constant 0 : index
    %13 = vector.load %arg2[%c0_5, %c0_6] : memref<8x128xf32, #tpu.memory_space<vmem>>, vector<8x128xf32>
    tpu.vector_store %arg2[%c0_5, %c0_6], %12 {strides = array<i32>} : memref<8x128xf32, #tpu.memory_space<vmem>>, vector<8x128xf32>,
    return
  }
}

module attributes {stable_mosaic.version = 11 : i64} {
  func.func @beta_edge_kernel(%arg0: memref<8x64xf32, #tpu.memory_space<vmem>>, %arg1: memref<128x64xf32, #tpu.memory_space<vmem>>, %arg2: memref<8x128xf32, #tpu.memory_space<vmem>>, %arg3: memref<8x128xf32, #tpu.memory_space<vmem>>) attributes {dimension_semantics = [], scalar_prefetch = 0 : i64, scratch_operands = 0 : i64, tpu.core_type = #tpu.core_type<tc>} {
    %c0 = arith.constant 0 : index
    %c0_0 = arith.constant 0 : index
    %0 = vector.load %arg0[%c0, %c0_0] : memref<8x64xf32, #tpu.memory_space<vmem>>, vector<8x64xf32>
    %c0_1 = arith.constant 0 : index
    %c0_2 = arith.constant 0 : index
    %1 = vector.load %arg1[%c0_1, %c0_2] : memref<128x64xf32, #tpu.memory_space<vmem>>, vector<128x64xf32>
    %cst = arith.constant dense<0.000000e+00> : vector<8x128xf32>
    %2 = tpu.matmul %0, %1, %cst {dimension_numbers = #tpu.dot_dimension_numbers<[1], [1], [0], [0], [0, 0, 1, 0], [], []>} : vector<8x64xf32>, vector<128x64xf32>, vector<8x128xf32> -> vector<8x128xf32>
    %c0_3 = arith.constant 0 : index
    %c0_4 = arith.constant 0 : index
    %3 = vector.load %arg2[%c0_3, %c0_4] : memref<8x128xf32, #tpu.memory_space<vmem>>, vector<8x128xf32>
    %4 = math.log %3 : vector<8x128xf32>
    %5 = arith.addf %2, %4 : vector<8x128xf32>
    %cst_5 = arith.constant dense<0xFF800000> : vector<8xf32>
    %6 = vector.multi_reduction <maximumf>, %5, %cst_5 [1] : vector<8x128xf32> to vector<8xf32>
    %7 = vector.shape_cast %6 : vector<8xf32> to vector<8x1xf32>
    %8 = vector.broadcast %7 : vector<8x1xf32> to vector<8x128xf32>
    %9 = arith.subf %2, %8 : vector<8x128xf32>
    %cst_6 = arith.constant 6.000000e+01 : f32
    %10 = vector.broadcast %cst_6 : f32 to vector<8x128xf32>
    %11 = arith.minimumf %9, %10 : vector<8x128xf32>
    %12 = math.exp %11 : vector<8x128xf32>
    %13 = arith.mulf %12, %3 : vector<8x128xf32>
    %cst_7 = arith.constant dense<0.000000e+00> : vector<8xf32>
    %14 = vector.multi_reduction <add>, %13, %cst_7 [1] : vector<8x128xf32> to vector<8xf32>
    %15 = vector.shape_cast %14 : vector<8xf32> to vector<8x1xf32>
    %16 = tpu.reciprocal %15 {approx = true} : vector<8x1xf32> -> vector<8x1xf32>
    %17 = vector.broadcast %16 : vector<8x1xf32> to vector<8x128xf32>
    %18 = arith.mulf %12, %17 : vector<8x128xf32>
    %c0_8 = arith.constant 0 : index
    %c0_9 = arith.constant 0 : index
    %19 = vector.load %arg3[%c0_8, %c0_9] : memref<8x128xf32, #tpu.memory_space<vmem>>, vector<8x128xf32>
    tpu.vector_store %arg3[%c0_8, %c0_9], %18 {strides = array<i32>} : memref<8x128xf32, #tpu.memory_space<vmem>>, vector<8x128xf32>,
    return
  }
}

module attributes {stable_mosaic.version = 11 : i64} {
  func.func @fused_struct_kernel(%arg0: memref<8x32xf32, #tpu.memory_space<vmem>>, %arg1: memref<8x64xf32, #tpu.memory_space<vmem>>, %arg2: memref<32x32xf32, #tpu.memory_space<vmem>>, %arg3: memref<32x64xf32, #tpu.memory_space<vmem>>, %arg4: memref<32x32xf32, #tpu.memory_space<vmem>>, %arg5: memref<32x64xf32, #tpu.memory_space<vmem>>, %arg6: memref<8x128xf32, #tpu.memory_space<vmem>>, %arg7: memref<8x128xf32, #tpu.memory_space<vmem>>, %arg8: memref<8x128xf32, #tpu.memory_space<vmem>>, %arg9: memref<8x128xf32, #tpu.memory_space<vmem>>, %arg10: memref<8x128xf32, #tpu.memory_space<vmem>>, %arg11: memref<8x128xf32, #tpu.memory_space<vmem>>, %arg12: memref<1x128xf32, #tpu.memory_space<vmem>>, %arg13: memref<2x128xf32, #tpu.memory_space<vmem>>, %arg14: memref<3x128xf32, #tpu.memory_space<vmem>>) attributes {dimension_semantics = [], scalar_prefetch = 0 : i64, scratch_operands = 0 : i64, tpu.core_type = #tpu.core_type<tc>} {
    %c0 = arith.constant 0 : index
    %c0_0 = arith.constant 0 : index
    %0 = vector.load %arg0[%c0, %c0_0] : memref<8x32xf32, #tpu.memory_space<vmem>>, vector<8x32xf32>
    %c0_1 = arith.constant 0 : index
    %c0_2 = arith.constant 0 : index
    %1 = vector.load %arg1[%c0_1, %c0_2] : memref<8x64xf32, #tpu.memory_space<vmem>>, vector<8x64xf32>
    %c0_3 = arith.constant 0 : index
    %c0_4 = arith.constant 0 : index
    %2 = vector.load %arg2[%c0_3, %c0_4] : memref<32x32xf32, #tpu.memory_space<vmem>>, vector<32x32xf32>
    %cst = arith.constant dense<0.000000e+00> : vector<8x32xf32>
    %3 = tpu.matmul %0, %2, %cst {dimension_numbers = #tpu.dot_dimension_numbers<[1], [1], [0], [0], [0, 0, 1, 0], [], []>} : vector<8x32xf32>, vector<32x32xf32>, vector<8x32xf32> -> vector<8x32xf32>
    %c0_5 = arith.constant 0 : index
    %c0_6 = arith.constant 0 : index
    %4 = vector.load %arg3[%c0_5, %c0_6] : memref<32x64xf32, #tpu.memory_space<vmem>>, vector<32x64xf32>
    %cst_7 = arith.constant dense<0.000000e+00> : vector<8x32xf32>
    %5 = tpu.matmul %1, %4, %cst_7 {dimension_numbers = #tpu.dot_dimension_numbers<[1], [1], [0], [0], [0, 0, 1, 0], [], []>} : vector<8x64xf32>, vector<32x64xf32>, vector<8x32xf32> -> vector<8x32xf32>
    %6 = arith.addf %3, %5 : vector<8x32xf32>
    %c0_8 = arith.constant 0 : index
    %c0_9 = arith.constant 0 : index
    %7 = vector.load %arg4[%c0_8, %c0_9] : memref<32x32xf32, #tpu.memory_space<vmem>>, vector<32x32xf32>
    %cst_10 = arith.constant dense<0.000000e+00> : vector<8x32xf32>
    %8 = tpu.matmul %0, %7, %cst_10 {dimension_numbers = #tpu.dot_dimension_numbers<[1], [1], [0], [0], [0, 0, 1, 0], [], []>} : vector<8x32xf32>, vector<32x32xf32>, vector<8x32xf32> -> vector<8x32xf32>
    %c0_11 = arith.constant 0 : index
    %c0_12 = arith.constant 0 : index
    %9 = vector.load %arg5[%c0_11, %c0_12] : memref<32x64xf32, #tpu.memory_space<vmem>>, vector<32x64xf32>
    %cst_13 = arith.constant dense<0.000000e+00> : vector<8x32xf32>
    %10 = tpu.matmul %1, %9, %cst_13 {dimension_numbers = #tpu.dot_dimension_numbers<[1], [1], [0], [0], [0, 0, 1, 0], [], []>} : vector<8x64xf32>, vector<32x64xf32>, vector<8x32xf32> -> vector<8x32xf32>
    %11 = arith.addf %8, %10 : vector<8x32xf32>
    %12 = arith.mulf %6, %6 : vector<8x32xf32>
    %cst_14 = arith.constant dense<0.000000e+00> : vector<8xf32>
    %13 = vector.multi_reduction <add>, %12, %cst_14 [1] : vector<8x32xf32> to vector<8xf32>
    %14 = vector.shape_cast %13 : vector<8xf32> to vector<8x1xf32>
    %15 = math.sqrt %14 : vector<8x1xf32>
    %cst_15 = arith.constant 1.000000e-10 : f32
    %16 = vector.broadcast %cst_15 : f32 to vector<8x1xf32>
    %17 = arith.maximumf %15, %16 : vector<8x1xf32>
    %18 = vector.broadcast %17 : vector<8x1xf32> to vector<8x32xf32>
    %19 = arith.divf %6, %18 : vector<8x32xf32>
    %20 = arith.mulf %11, %11 : vector<8x32xf32>
    %cst_16 = arith.constant dense<0.000000e+00> : vector<8xf32>
    %21 = vector.multi_reduction <add>, %20, %cst_16 [1] : vector<8x32xf32> to vector<8xf32>
    %22 = vector.shape_cast %21 : vector<8xf32> to vector<8x1xf32>
    %23 = math.sqrt %22 : vector<8x1xf32>
    %cst_17 = arith.constant 1.000000e-10 : f32
    %24 = vector.broadcast %cst_17 : f32 to vector<8x1xf32>
    %25 = arith.maximumf %23, %24 : vector<8x1xf32>
    %26 = vector.broadcast %25 : vector<8x1xf32> to vector<8x32xf32>
    %27 = arith.divf %11, %26 : vector<8x32xf32>
    %cst_18 = arith.constant dense<0.000000e+00> : vector<8x8xf32>
    %28 = tpu.matmul %27, %19, %cst_18 {dimension_numbers = #tpu.dot_dimension_numbers<[1], [1], [0], [0], [0, 0, 1, 0], [], []>} : vector<8x32xf32>, vector<8x32xf32>, vector<8x8xf32> -> vector<8x8xf32>
    %cst_19 = arith.constant -4.000000e+00 : f32
    %29 = vector.broadcast %cst_19 : f32 to vector<8x8xf32>
    %30 = arith.mulf %29, %28 : vector<8x8xf32>
    %cst_20 = arith.constant 0.000000e+00 : f32
    %31 = vector.broadcast %cst_20 : f32 to vector<8x8xf32>
    %32 = arith.maximumf %30, %31 : vector<8x8xf32>
    %33 = math.absf %30 : vector<8x8xf32>
    %cst_21 = arith.constant 0.000000e+00 : f32
    %34 = vector.broadcast %cst_21 : f32 to vector<8x8xf32>
    %35 = arith.subf %34, %33 : vector<8x8xf32>
    %36 = math.exp %35 : vector<8x8xf32>
    %cst_22 = arith.constant 1.000000e+00 : f32
    %37 = vector.broadcast %cst_22 : f32 to vector<8x8xf32>
    %38 = arith.addf %37, %36 : vector<8x8xf32>
    %39 = math.log %38 : vector<8x8xf32>
    %40 = arith.addf %32, %39 : vector<8x8xf32>
    %cst_23 = arith.constant 0.000000e+00 : f32
    %41 = vector.broadcast %cst_23 : f32 to vector<8x8xf32>
    %42 = arith.subf %41, %40 : vector<8x8xf32>
    %cst_24 = arith.constant -9.21034049 : f32
    %cst_25 = arith.constant -1.000050e-04 : f32
    %43 = vector.broadcast %cst_24 : f32 to vector<8x8xf32>
    %44 = arith.maximumf %43, %42 : vector<8x8xf32>
    %45 = vector.broadcast %cst_25 : f32 to vector<8x8xf32>
    %46 = arith.minimumf %45, %44 : vector<8x8xf32>
    %cst_26 = arith.constant 4.000000e+00 : f32
    %47 = vector.broadcast %cst_26 : f32 to vector<8x8xf32>
    %48 = arith.mulf %47, %28 : vector<8x8xf32>
    %cst_27 = arith.constant 0.000000e+00 : f32
    %49 = vector.broadcast %cst_27 : f32 to vector<8x8xf32>
    %50 = arith.maximumf %48, %49 : vector<8x8xf32>
    %51 = math.absf %48 : vector<8x8xf32>
    %cst_28 = arith.constant 0.000000e+00 : f32
    %52 = vector.broadcast %cst_28 : f32 to vector<8x8xf32>
    %53 = arith.subf %52, %51 : vector<8x8xf32>
    %54 = math.exp %53 : vector<8x8xf32>
    %cst_29 = arith.constant 1.000000e+00 : f32
    %55 = vector.broadcast %cst_29 : f32 to vector<8x8xf32>
    %56 = arith.addf %55, %54 : vector<8x8xf32>
    %57 = math.log %56 : vector<8x8xf32>
    %58 = arith.addf %50, %57 : vector<8x8xf32>
    %cst_30 = arith.constant 0.000000e+00 : f32
    %59 = vector.broadcast %cst_30 : f32 to vector<8x8xf32>
    %60 = arith.subf %59, %58 : vector<8x8xf32>
    %cst_31 = arith.constant -9.21034049 : f32
    %cst_32 = arith.constant -1.000050e-04 : f32
    %61 = vector.broadcast %cst_31 : f32 to vector<8x8xf32>
    %62 = arith.maximumf %61, %60 : vector<8x8xf32>
    %63 = vector.broadcast %cst_32 : f32 to vector<8x8xf32>
    %64 = arith.minimumf %63, %62 : vector<8x8xf32>
    %c0_33 = arith.constant 0 : index
    %c0_34 = arith.constant 0 : index
    %65 = vector.load %arg6[%c0_33, %c0_34] : memref<8x128xf32, #tpu.memory_space<vmem>>, vector<8x128xf32>
    %c0_35 = arith.constant 0 : index
    %c0_36 = arith.constant 0 : index
    %66 = vector.load %arg7[%c0_35, %c0_36] : memref<8x128xf32, #tpu.memory_space<vmem>>, vector<8x128xf32>
    %c0_37 = arith.constant 0 : index
    %c0_38 = arith.constant 0 : index
    %67 = vector.load %arg8[%c0_37, %c0_38] : memref<8x128xf32, #tpu.memory_space<vmem>>, vector<8x128xf32>
    %cst_39 = arith.constant dense<0.000000e+00> : vector<8x128xf32>
    %68 = tpu.matmul %46, %66, %cst_39 {dimension_numbers = #tpu.dot_dimension_numbers<[1], [0], [0], [1], [0, 0, 1, 1], [], []>} : vector<8x8xf32>, vector<8x128xf32>, vector<8x128xf32> -> vector<8x128xf32>
    %69 = arith.mulf %68, %67 : vector<8x128xf32>
    %cst_40 = arith.constant dense<0.000000e+00> : vector<128xf32>
    %70 = vector.multi_reduction <add>, %69, %cst_40 [0] : vector<8x128xf32> to vector<128xf32>
    %71 = vector.shape_cast %70 : vector<128xf32> to vector<1x128xf32>
    %cst_41 = arith.constant dense<0.000000e+00> : vector<8x128xf32>
    %72 = tpu.matmul %64, %66, %cst_41 {dimension_numbers = #tpu.dot_dimension_numbers<[1], [0], [0], [1], [0, 0, 1, 1], [], []>} : vector<8x8xf32>, vector<8x128xf32>, vector<8x128xf32> -> vector<8x128xf32>
    %73 = arith.mulf %72, %67 : vector<8x128xf32>
    %cst_42 = arith.constant dense<0.000000e+00> : vector<128xf32>
    %74 = vector.multi_reduction <add>, %73, %cst_42 [0] : vector<8x128xf32> to vector<128xf32>
    %75 = vector.shape_cast %74 : vector<128xf32> to vector<1x128xf32>
    %c0_43 = arith.constant 0 : index
    %c0_44 = arith.constant 0 : index
    %76 = vector.load %arg12[%c0_43, %c0_44] : memref<1x128xf32, #tpu.memory_space<vmem>>, vector<1x128xf32>
    %77 = arith.mulf %75, %76 : vector<1x128xf32>
    %cst_45 = arith.constant dense<0.000000e+00> : vector<8x128xf32>
    %78 = tpu.matmul %64, %65, %cst_45 {dimension_numbers = #tpu.dot_dimension_numbers<[1], [0], [0], [1], [0, 0, 1, 1], [], []>} : vector<8x8xf32>, vector<8x128xf32>, vector<8x128xf32> -> vector<8x128xf32>
    %c0_46 = arith.constant 0 : index
    %c0_47 = arith.constant 0 : index
    %79 = vector.load %arg9[%c0_46, %c0_47] : memref<8x128xf32, #tpu.memory_space<vmem>>, vector<8x128xf32>
    %80 = arith.subf %79, %65 : vector<8x128xf32>
    %81 = arith.mulf %78, %80 : vector<8x128xf32>
    %cst_48 = arith.constant dense<0.000000e+00> : vector<128xf32>
    %82 = vector.multi_reduction <add>, %81, %cst_48 [0] : vector<8x128xf32> to vector<128xf32>
    %83 = vector.shape_cast %82 : vector<128xf32> to vector<1x128xf32>
    %c0_49 = arith.constant 0 : index
    %c0_50 = arith.constant 0 : index
    %84 = vector.load %arg10[%c0_49, %c0_50] : memref<8x128xf32, #tpu.memory_space<vmem>>, vector<8x128xf32>
    %cst_51 = arith.constant 9.99999997E-7 : f32
    %85 = vector.broadcast %cst_51 : f32 to vector<8x128xf32>
    %86 = arith.addf %84, %85 : vector<8x128xf32>
    %87 = math.log %86 : vector<8x128xf32>
    %88 = arith.mulf %65, %87 : vector<8x128xf32>
    %cst_52 = arith.constant dense<0.000000e+00> : vector<128xf32>
    %89 = vector.multi_reduction <add>, %88, %cst_52 [0] : vector<8x128xf32> to vector<128xf32>
    %90 = vector.shape_cast %89 : vector<128xf32> to vector<1x128xf32>
    %c0_53 = arith.constant 0 : index
    %c0_54 = arith.constant 0 : index
    %91 = vector.load %arg11[%c0_53, %c0_54] : memref<8x128xf32, #tpu.memory_space<vmem>>, vector<8x128xf32>
    %cst_55 = arith.constant 1.000000e-10 : f32
    %92 = vector.broadcast %cst_55 : f32 to vector<8x128xf32>
    %93 = arith.addf %91, %92 : vector<8x128xf32>
    %94 = arith.divf %65, %93 : vector<8x128xf32>
    %cst_56 = arith.constant 1.000000e-10 : f32
    %95 = vector.broadcast %cst_56 : f32 to vector<8x128xf32>
    %96 = arith.addf %94, %95 : vector<8x128xf32>
    %97 = math.log %96 : vector<8x128xf32>
    %98 = arith.mulf %65, %97 : vector<8x128xf32>
    %cst_57 = arith.constant dense<0.000000e+00> : vector<128xf32>
    %99 = vector.multi_reduction <add>, %98, %cst_57 [0] : vector<8x128xf32> to vector<128xf32>
    %100 = vector.shape_cast %99 : vector<128xf32> to vector<1x128xf32>
    %101 = tpu.concatenate %71, %77 in 0 : vector<1x128xf32>, vector<1x128xf32> -> vector<2x128xf32>
    %c0_58 = arith.constant 0 : index
    %c0_59 = arith.constant 0 : index
    %102 = vector.load %arg13[%c0_58, %c0_59] : memref<2x128xf32, #tpu.memory_space<vmem>>, vector<2x128xf32>
    tpu.vector_store %arg13[%c0_58, %c0_59], %101 {strides = array<i32>} : memref<2x128xf32, #tpu.memory_space<vmem>>, vector<2x128xf32>,
    %103 = tpu.concatenate %83, %90, %100 in 0 : vector<1x128xf32>, vector<1x128xf32>, vector<1x128xf32> -> vector<3x128xf32>
    %c0_60 = arith.constant 0 : index
    %c0_61 = arith.constant 0 : index
    %104 = vector.load %arg14[%c0_60, %c0_61] : memref<3x128xf32, #tpu.memory_space<vmem>>, vector<3x128xf32>
    tpu.vector_store %arg14[%c0_60, %c0_61], %103 {strides = array<i32>} : memref<3x128xf32, #tpu.memory_space<vmem>>, vector<3x128xf32>,
    return
  }
}

</mosaic_0001>

<llo_original>
// kernel: _lambda_.3
$region0: #{_lambda_.3}
  #allocation0 [shape = 'u32[]', space=smem, size = 0x4, offset = 0x4, fixed_abs, tag = 'smem constant byte address 0x4 - core index']
  #allocation1 [shape = 'u32[72,128]{1,0:T(1,128)}', space=vmem, size = 0x9000, scoped, tag = 'internal scratch']
  %s0 = inlined_call_operand.vmem [shape: f32[8,32], index: 0, kind: input, shape index: {}]
  %s1 = inlined_call_operand.vmem [shape: f32[128,32], index: 1, kind: input, shape index: {}]
  %s2 = inlined_call_operand.vmem [shape: f32[8,128], index: 2, kind: output, shape index: {}]
  %s3 = sld [smem:[#allocation0]]
  $region18: #{_lambda_.3} parent=0
    _
  %s5 = ssub.s32 1, %s3
  %s6 = scalar_select 0, %s5, %s3
  // Predicated region
  $region2: #{_lambda_.3} parent=0 // pred_check
    _
  $region3: #{_lambda_.3} parent=0 // pred_check_branch
    %8 = sbr.rel (0) target = $region5
  $region4: #{_lambda_.3} parent=0 // pred_region
    _
  $region5: #{_lambda_.3} parent=0 // pred_fallthru
    _
  // Predicated region
  $region6: #{_lambda_.3} parent=0 // pred_check
    _
  $region7: #{_lambda_.3} parent=0 // pred_check_branch
    %10 = sbr.rel (0) target = $region9
  $region8: #{_lambda_.3} parent=0 // pred_region
    _
  $region9: #{_lambda_.3} parent=0 // pred_fallthru
    _
  %v11 = vld [vmem:[%s0] sm:$0xff]
  %v12 = vld [vmem:[%s1] sm:$0xff]
  %v13 = vld [vmem:[%s1 + $0x8] sm:$0xff]
  %v14 = vld [vmem:[%s1 + $0x10] sm:$0xff]
  %v15 = vld [vmem:[%s1 + $0x18] sm:$0xff]
  %v16 = vld [vmem:[%s1 + $0x20] sm:$0xff]
  %v17 = vld [vmem:[%s1 + $0x28] sm:$0xff]
  %v18 = vld [vmem:[%s1 + $0x30] sm:$0xff]
  %v19 = vld [vmem:[%s1 + $0x38] sm:$0xff]
  %v20 = vld [vmem:[%s1 + $0x40] sm:$0xff]
  %v21 = vld [vmem:[%s1 + $0x48] sm:$0xff]
  %v22 = vld [vmem:[%s1 + $0x50] sm:$0xff]
  %v23 = vld [vmem:[%s1 + $0x58] sm:$0xff]
  %v24 = vld [vmem:[%s1 + $0x60] sm:$0xff]
  %v25 = vld [vmem:[%s1 + $0x68] sm:$0xff]
  %v26 = vld [vmem:[%s1 + $0x70] sm:$0xff]
  %v27 = vld [vmem:[%s1 + $0x78] sm:$0xff]
  %vm28 = vcmask 261120
  %v30 = vsel %vm28, %v11, 0
  %v33 = vsel %vm28, %v12, 0
  %v36 = vsel %vm28, %v13, 0
  %v39 = vsel %vm28, %v14, 0
  %v42 = vsel %vm28, %v15, 0
  %v45 = vsel %vm28, %v16, 0
  %v48 = vsel %vm28, %v17, 0
  %v51 = vsel %vm28, %v18, 0
  %v54 = vsel %vm28, %v19, 0
  %v57 = vsel %vm28, %v20, 0
  %v60 = vsel %vm28, %v21, 0
  %v63 = vsel %vm28, %v22, 0
  %v66 = vsel %vm28, %v23, 0
  %v69 = vsel %vm28, %v24, 0
  %v72 = vsel %vm28, %v25, 0
  %v75 = vsel %vm28, %v26, 0
  %v78 = vsel %vm28, %v27, 0
  %80 = vmatpush.xpose.msra.mxu0 %v78
  %81 = vmatpush.xpose.msra.mxu0 %v75
  %82 = vmatpush.xpose.msra.mxu0 %v72
  %83 = vmatpush.xpose.msra.mxu0 %v69
  %84 = vmatpush.xpose.msra.mxu0 %v66
  %85 = vmatpush.xpose.msra.mxu0 %v63
  %86 = vmatpush.xpose.msra.mxu0 %v60
  %87 = vmatpush.xpose.msra.mxu0 %v57
  %88 = vmatpush.xpose.msra.mxu0 %v54
  %89 = vmatpush.xpose.msra.mxu0 %v51
  %90 = vmatpush.xpose.msra.mxu0 %v48
  %91 = vmatpush.xpose.msra.mxu0 %v45
  %92 = vmatpush.xpose.msra.mxu0 %v42
  %93 = vmatpush.xpose.msra.mxu0 %v39
  %94 = vmatpush.xpose.msra.mxu0 %v36
  %95 = vmatpush.xpose.msra.mxu0 %v33
  %96 = vmatmul.f32.gmra.mxu0 %v30
  %v97 = vpop.f32.mrf.mxu0
  %v98 = vadd.f32 0.0, %v97
  %99 = vdwg.mxu0
  %100 = vmax.xlane.f32.xlu0 %v98
  %v101 = vpop.xlane.xlu0 %100
  %v102 = vsub.f32 %v98, %v101
  %v103 = vmul.f32 %v102, 1.442695
  %v104 = vpow.pop %v103
  %105 = vadd.xlane.f32.xlu0 %v104
  %v106 = vpop.xlane.xlu0 %105
  %v107 = vrcp.pop %v106
  %v108 = vmul.f32 %v104, %v107
  %109 = vst [vmem:[%s2] sm:$0xff] %v108
  // Predicated region
  $region10: #{_lambda_.3} parent=0 // pred_check
    _
  $region11: #{_lambda_.3} parent=0 // pred_check_branch
    %111 = sbr.rel (0) target = $region13
  $region12: #{_lambda_.3} parent=0 // pred_region
    _
  $region13: #{_lambda_.3} parent=0 // pred_fallthru
    _
  // Predicated region
  $region14: #{_lambda_.3} parent=0 // pred_check
    _
  $region15: #{_lambda_.3} parent=0 // pred_check_branch
    %113 = sbr.rel (0) target = $region17
  $region16: #{_lambda_.3} parent=0 // pred_region
    _
  $region17: #{_lambda_.3} parent=0 // pred_fallthru
    _

// kernel: _lambda_.5
$region0: #{_lambda_.5}
  #allocation0 [shape = 'u32[]', space=smem, size = 0x4, offset = 0x4, fixed_abs, tag = 'smem constant byte address 0x4 - core index']
  #allocation1 [shape = 'u32[72,128]{1,0:T(1,128)}', space=vmem, size = 0x9000, scoped, tag = 'internal scratch']
  %s0 = inlined_call_operand.vmem [shape: f32[8,64], index: 0, kind: input, shape index: {}]
  %s1 = inlined_call_operand.vmem [shape: f32[128,64], index: 1, kind: input, shape index: {}]
  %s2 = inlined_call_operand.vmem [shape: f32[8,128], index: 2, kind: input, shape index: {}]
  %s3 = inlined_call_operand.vmem [shape: f32[8,128], index: 3, kind: output, shape index: {}]
  %s4 = sld [smem:[#allocation0]]
  $region22: #{_lambda_.5} parent=0
    _
  %s6 = ssub.s32 1, %s4
  %s7 = scalar_select 0, %s6, %s4
  // Predicated region
  $region2: #{_lambda_.5} parent=0 // pred_check
    _
  $region3: #{_lambda_.5} parent=0 // pred_check_branch
    %9 = sbr.rel (0) target = $region5
  $region4: #{_lambda_.5} parent=0 // pred_region
    _
  $region5: #{_lambda_.5} parent=0 // pred_fallthru
    _
  // Predicated region
  $region6: #{_lambda_.5} parent=0 // pred_check
    _
  $region7: #{_lambda_.5} parent=0 // pred_check_branch
    %11 = sbr.rel (0) target = $region9
  $region8: #{_lambda_.5} parent=0 // pred_region
    _
  $region9: #{_lambda_.5} parent=0 // pred_fallthru
    _
  // Predicated region
  $region10: #{_lambda_.5} parent=0 // pred_check
    _
  $region11: #{_lambda_.5} parent=0 // pred_check_branch
    %13 = sbr.rel (0) target = $region13
  $region12: #{_lambda_.5} parent=0 // pred_region
    _
  $region13: #{_lambda_.5} parent=0 // pred_fallthru
    _
  %v14 = vld [vmem:[%s0] sm:$0xff]
  %v15 = vld [vmem:[%s1] sm:$0xff]
  %v16 = vld [vmem:[%s1 + $0x8] sm:$0xff]
  %v17 = vld [vmem:[%s1 + $0x10] sm:$0xff]
  %v18 = vld [vmem:[%s1 + $0x18] sm:$0xff]
  %v19 = vld [vmem:[%s1 + $0x20] sm:$0xff]
  %v20 = vld [vmem:[%s1 + $0x28] sm:$0xff]
  %v21 = vld [vmem:[%s1 + $0x30] sm:$0xff]
  %v22 = vld [vmem:[%s1 + $0x38] sm:$0xff]
  %v23 = vld [vmem:[%s1 + $0x40] sm:$0xff]
  %v24 = vld [vmem:[%s1 + $0x48] sm:$0xff]
  %v25 = vld [vmem:[%s1 + $0x50] sm:$0xff]
  %v26 = vld [vmem:[%s1 + $0x58] sm:$0xff]
  %v27 = vld [vmem:[%s1 + $0x60] sm:$0xff]
  %v28 = vld [vmem:[%s1 + $0x68] sm:$0xff]
  %v29 = vld [vmem:[%s1 + $0x70] sm:$0xff]
  %v30 = vld [vmem:[%s1 + $0x78] sm:$0xff]
  %vm31 = vcmask 523264
  %v33 = vsel %vm31, %v14, 0
  %v36 = vsel %vm31, %v15, 0
  %v39 = vsel %vm31, %v16, 0
  %v42 = vsel %vm31, %v17, 0
  %v45 = vsel %vm31, %v18, 0
  %v48 = vsel %vm31, %v19, 0
  %v51 = vsel %vm31, %v20, 0
  %v54 = vsel %vm31, %v21, 0
  %v57 = vsel %vm31, %v22, 0
  %v60 = vsel %vm31, %v23, 0
  %v63 = vsel %vm31, %v24, 0
  %v66 = vsel %vm31, %v25, 0
  %v69 = vsel %vm31, %v26, 0
  %v72 = vsel %vm31, %v27, 0
  %v75 = vsel %vm31, %v28, 0
  %v78 = vsel %vm31, %v29, 0
  %v81 = vsel %vm31, %v30, 0
  %83 = vmatpush.xpose.msra.mxu0 %v81
  %84 = vmatpush.xpose.msra.mxu0 %v78
  %85 = vmatpush.xpose.msra.mxu0 %v75
  %86 = vmatpush.xpose.msra.mxu0 %v72
  %87 = vmatpush.xpose.msra.mxu0 %v69
  %88 = vmatpush.xpose.msra.mxu0 %v66
  %89 = vmatpush.xpose.msra.mxu0 %v63
  %90 = vmatpush.xpose.msra.mxu0 %v60
  %91 = vmatpush.xpose.msra.mxu0 %v57
  %92 = vmatpush.xpose.msra.mxu0 %v54
  %93 = vmatpush.xpose.msra.mxu0 %v51
  %94 = vmatpush.xpose.msra.mxu0 %v48
  %95 = vmatpush.xpose.msra.mxu0 %v45
  %96 = vmatpush.xpose.msra.mxu0 %v42
  %97 = vmatpush.xpose.msra.mxu0 %v39
  %98 = vmatpush.xpose.msra.mxu0 %v36
  %99 = vmatmul.f32.gmra.mxu0 %v33
  %v100 = vpop.f32.mrf.mxu0
  %v101 = vadd.f32 0.0, %v100
  %102 = vdwg.mxu0
  %v103 = vld [vmem:[%s2] sm:$0xff]
  %v104 = vlog2.pop %v103
  %v105 = vmul.f32 %v104, 0.6931472
  %v106 = vadd.f32 %v101, %v105
  %107 = vmax.xlane.f32.xlu0 %v106
  %v108 = vpop.xlane.xlu0 %107
  %v109 = vsub.f32 %v101, %v108
  %v110 = vmin.f32 %v109, 60.0
  %v111 = vmul.f32 %v110, 1.442695
  %v112 = vpow.pop %v111
  %v113 = vmul.f32 %v112, %v103
  %114 = vadd.xlane.f32.xlu0 %v113
  %v115 = vpop.xlane.xlu0 %114
  %v116 = vrcp.pop %v115
  %v117 = vmul.f32 %v112, %v116
  %118 = vst [vmem:[%s3] sm:$0xff] %v117
  // Predicated region
  $region14: #{_lambda_.5} parent=0 // pred_check
    _
  $region15: #{_lambda_.5} parent=0 // pred_check_branch
    %120 = sbr.rel (0) target = $region17
  $region16: #{_lambda_.5} parent=0 // pred_region
    _
  $region17: #{_lambda_.5} parent=0 // pred_fallthru
    _
  // Predicated region
  $region18: #{_lambda_.5} parent=0 // pred_check
    _
  $region19: #{_lambda_.5} parent=0 // pred_check_branch
    %122 = sbr.rel (0) target = $region21
  $region20: #{_lambda_.5} parent=0 // pred_region
    _
  $region21: #{_lambda_.5} parent=0 // pred_fallthru
    _

// kernel: _lambda_.4
$region0: #{_lambda_.4}
  #allocation0 [shape = 'u32[]', space=smem, size = 0x4, offset = 0x4, fixed_abs, tag = 'smem constant byte address 0x4 - core index']
  #allocation1 [shape = 'u32[72,128]{1,0:T(1,128)}', space=vmem, size = 0x9000, scoped, tag = 'internal scratch']
  %s0 = inlined_call_operand.vmem [shape: f32[8,32], index: 0, kind: input, shape index: {}]
  %s1 = inlined_call_operand.vmem [shape: f32[8,64], index: 1, kind: input, shape index: {}]
  %s2 = inlined_call_operand.vmem [shape: f32[32,32], index: 2, kind: input, shape index: {}]
  %s3 = inlined_call_operand.vmem [shape: f32[32,64], index: 3, kind: input, shape index: {}]
  %s4 = inlined_call_operand.vmem [shape: f32[32,32], index: 4, kind: input, shape index: {}]
  %s5 = inlined_call_operand.vmem [shape: f32[32,64], index: 5, kind: input, shape index: {}]
  %s6 = inlined_call_operand.vmem [shape: f32[8,128], index: 6, kind: input, shape index: {}]
  %s7 = inlined_call_operand.vmem [shape: f32[8,128], index: 7, kind: input, shape index: {}]
  %s8 = inlined_call_operand.vmem [shape: f32[8,128], index: 8, kind: input, shape index: {}]
  %s9 = inlined_call_operand.vmem [shape: f32[8,128], index: 9, kind: input, shape index: {}]
  %s10 = inlined_call_operand.vmem [shape: f32[8,128], index: 10, kind: input, shape index: {}]
  %s11 = inlined_call_operand.vmem [shape: f32[8,128], index: 11, kind: input, shape index: {}]
  %s12 = inlined_call_operand.vmem [shape: f32[1,128], index: 12, kind: input, shape index: {}]
  %s13 = inlined_call_operand.vmem [shape: f32[2,128], index: 13, kind: output, shape index: {0}]
  %s14 = inlined_call_operand.vmem [shape: f32[3,128], index: 14, kind: output, shape index: {1}]
  %15 = xla_tuple %s13, %s14
  %s16 = sld [smem:[#allocation0]]
  $region70: #{_lambda_.4} parent=0
    _
  %s18 = ssub.s32 1, %s16
  %s19 = scalar_select 0, %s18, %s16
  // Predicated region
  $region2: #{_lambda_.4} parent=0 // pred_check
    _
  $region3: #{_lambda_.4} parent=0 // pred_check_branch
    %21 = sbr.rel (0) target = $region5
  $region4: #{_lambda_.4} parent=0 // pred_region
    _
  $region5: #{_lambda_.4} parent=0 // pred_fallthru
    _
  // Predicated region
  $region6: #{_lambda_.4} parent=0 // pred_check
    _
  $region7: #{_lambda_.4} parent=0 // pred_check_branch
    %23 = sbr.rel (0) target = $region9
  $region8: #{_lambda_.4} parent=0 // pred_region
    _
  $region9: #{_lambda_.4} parent=0 // pred_fallthru
    _
  // Predicated region
  $region10: #{_lambda_.4} parent=0 // pred_check
    _
  $region11: #{_lambda_.4} parent=0 // pred_check_branch
    %25 = sbr.rel (0) target = $region13
  $region12: #{_lambda_.4} parent=0 // pred_region
    _
  $region13: #{_lambda_.4} parent=0 // pred_fallthru
    _
  // Predicated region
  $region14: #{_lambda_.4} parent=0 // pred_check
    _
  $region15: #{_lambda_.4} parent=0 // pred_check_branch
    %27 = sbr.rel (0) target = $region17
  $region16: #{_lambda_.4} parent=0 // pred_region
    _
  $region17: #{_lambda_.4} parent=0 // pred_fallthru
    _
  // Predicated region
  $region18: #{_lambda_.4} parent=0 // pred_check
    _
  $region19: #{_lambda_.4} parent=0 // pred_check_branch
    %29 = sbr.rel (0) target = $region21
  $region20: #{_lambda_.4} parent=0 // pred_region
    _
  $region21: #{_lambda_.4} parent=0 // pred_fallthru
    _
  // Predicated region
  $region22: #{_lambda_.4} parent=0 // pred_check
    _
  $region23: #{_lambda_.4} parent=0 // pred_check_branch
    %31 = sbr.rel (0) target = $region25
  $region24: #{_lambda_.4} parent=0 // pred_region
    _
  $region25: #{_lambda_.4} parent=0 // pred_fallthru
    _
  // Predicated region
  $region26: #{_lambda_.4} parent=0 // pred_check
    _
  $region27: #{_lambda_.4} parent=0 // pred_check_branch
    %33 = sbr.rel (0) target = $region29
  $region28: #{_lambda_.4} parent=0 // pred_region
    _
  $region29: #{_lambda_.4} parent=0 // pred_fallthru
    _
  // Predicated region
  $region30: #{_lambda_.4} parent=0 // pred_check
    _
  $region31: #{_lambda_.4} parent=0 // pred_check_branch
    %35 = sbr.rel (0) target = $region33
  $region32: #{_lambda_.4} parent=0 // pred_region
    _
  $region33: #{_lambda_.4} parent=0 // pred_fallthru
    _
  // Predicated region
  $region34: #{_lambda_.4} parent=0 // pred_check
    _
  $region35: #{_lambda_.4} parent=0 // pred_check_branch
    %37 = sbr.rel (0) target = $region37
  $region36: #{_lambda_.4} parent=0 // pred_region
    _
  $region37: #{_lambda_.4} parent=0 // pred_fallthru
    _
  // Predicated region
  $region38: #{_lambda_.4} parent=0 // pred_check
    _
  $region39: #{_lambda_.4} parent=0 // pred_check_branch
    %39 = sbr.rel (0) target = $region41
  $region40: #{_lambda_.4} parent=0 // pred_region
    _
  $region41: #{_lambda_.4} parent=0 // pred_fallthru
    _
  // Predicated region
  $region42: #{_lambda_.4} parent=0 // pred_check
    _
  $region43: #{_lambda_.4} parent=0 // pred_check_branch
    %41 = sbr.rel (0) target = $region45
  $region44: #{_lambda_.4} parent=0 // pred_region
    _
  $region45: #{_lambda_.4} parent=0 // pred_fallthru
    _
  // Predicated region
  $region46: #{_lambda_.4} parent=0 // pred_check
    _
  $region47: #{_lambda_.4} parent=0 // pred_check_branch
    %43 = sbr.rel (0) target = $region49
  $region48: #{_lambda_.4} parent=0 // pred_region
    _
  $region49: #{_lambda_.4} parent=0 // pred_fallthru
    _
  // Predicated region
  $region50: #{_lambda_.4} parent=0 // pred_check
    _
  $region51: #{_lambda_.4} parent=0 // pred_check_branch
    %45 = sbr.rel (0) target = $region53
  $region52: #{_lambda_.4} parent=0 // pred_region
    _
  $region53: #{_lambda_.4} parent=0 // pred_fallthru
    _
  %v46 = vld [vmem:[%s0] sm:$0xff]
  %v47 = vld [vmem:[%s1] sm:$0xff]
  %v48 = vld [vmem:[%s2] sm:$0xff]
  %v49 = vld [vmem:[%s2 + $0x8] sm:$0xff]
  %v50 = vld [vmem:[%s2 + $0x10] sm:$0xff]
  %v51 = vld [vmem:[%s2 + $0x18] sm:$0xff]
  %v52 = vld [vmem:[%s3] sm:$0xff]
  %v53 = vld [vmem:[%s3 + $0x8] sm:$0xff]
  %v54 = vld [vmem:[%s3 + $0x10] sm:$0xff]
  %v55 = vld [vmem:[%s3 + $0x18] sm:$0xff]
  %vm56 = vcmask 523264
  %v58 = vsel %vm56, %v47, 0
  %v61 = vsel %vm56, %v52, 0
  %v64 = vsel %vm56, %v53, 0
  %v67 = vsel %vm56, %v54, 0
  %v70 = vsel %vm56, %v55, 0
  %72 = vmatpush.xpose.msra.mxu0 0.0
  %73 = vmatpush.xpose.msra.mxu0 0.0
  %74 = vmatpush.xpose.msra.mxu0 0.0
  %75 = vmatpush.xpose.msra.mxu0 0.0
  %76 = vmatpush.xpose.msra.mxu0 0.0
  %77 = vmatpush.xpose.msra.mxu0 0.0
  %78 = vmatpush.xpose.msra.mxu0 0.0
  %79 = vmatpush.xpose.msra.mxu0 0.0
  %80 = vmatpush.xpose.msra.mxu0 0.0
  %81 = vmatpush.xpose.msra.mxu0 0.0
  %82 = vmatpush.xpose.msra.mxu0 0.0
  %83 = vmatpush.xpose.msra.mxu0 0.0
  %84 = vmatpush.xpose.msra.mxu0 %v70
  %85 = vmatpush.xpose.msra.mxu0 %v67
  %86 = vmatpush.xpose.msra.mxu0 %v64
  %87 = vmatpush.xpose.msra.mxu0 %v61
  %88 = vmatmul.f32.gmra.mxu0 %v58
  %v89 = vpop.f32.mrf.mxu0
  %v90 = vadd.f32 0.0, %v89
  %91 = vdwg.mxu0
  %vm92 = vcmask 261120
  %v94 = vsel %vm92, %v46, 0
  %v97 = vsel %vm92, %v48, 0
  %v100 = vsel %vm92, %v49, 0
  %v103 = vsel %vm92, %v50, 0
  %v106 = vsel %vm92, %v51, 0
  %108 = vmatpush.xpose.msra.mxu0 0.0
  %109 = vmatpush.xpose.msra.mxu0 0.0
  %110 = vmatpush.xpose.msra.mxu0 0.0
  %111 = vmatpush.xpose.msra.mxu0 0.0
  %112 = vmatpush.xpose.msra.mxu0 0.0
  %113 = vmatpush.xpose.msra.mxu0 0.0
  %114 = vmatpush.xpose.msra.mxu0 0.0
  %115 = vmatpush.xpose.msra.mxu0 0.0
  %116 = vmatpush.xpose.msra.mxu0 0.0
  %117 = vmatpush.xpose.msra.mxu0 0.0
  %118 = vmatpush.xpose.msra.mxu0 0.0
  %119 = vmatpush.xpose.msra.mxu0 0.0
  %120 = vmatpush.xpose.msra.mxu0 %v106
  %121 = vmatpush.xpose.msra.mxu0 %v103
  %122 = vmatpush.xpose.msra.mxu0 %v100
  %123 = vmatpush.xpose.msra.mxu0 %v97
  %124 = vmatmul.f32.gmra.mxu0 %v94
  %v125 = vpop.f32.mrf.mxu0
  %v126 = vadd.f32 %v90, %v125
  %127 = vdwg.mxu0
  %v128 = vld [vmem:[%s4] sm:$0xff]
  %v129 = vld [vmem:[%s4 + $0x8] sm:$0xff]
  %v130 = vld [vmem:[%s4 + $0x10] sm:$0xff]
  %v131 = vld [vmem:[%s4 + $0x18] sm:$0xff]
  %v132 = vld [vmem:[%s5] sm:$0xff]
  %v133 = vld [vmem:[%s5 + $0x8] sm:$0xff]
  %v134 = vld [vmem:[%s5 + $0x10] sm:$0xff]
  %v135 = vld [vmem:[%s5 + $0x18] sm:$0xff]
  %v137 = vsel %vm56, %v132, 0
  %v140 = vsel %vm56, %v133, 0
  %v143 = vsel %vm56, %v134, 0
  %v146 = vsel %vm56, %v135, 0
  %148 = vmatpush.xpose.msra.mxu0 0.0
  %149 = vmatpush.xpose.msra.mxu0 0.0
  %150 = vmatpush.xpose.msra.mxu0 0.0
  %151 = vmatpush.xpose.msra.mxu0 0.0
  %152 = vmatpush.xpose.msra.mxu0 0.0
  %153 = vmatpush.xpose.msra.mxu0 0.0
  %154 = vmatpush.xpose.msra.mxu0 0.0
  %155 = vmatpush.xpose.msra.mxu0 0.0
  %156 = vmatpush.xpose.msra.mxu0 0.0
  %157 = vmatpush.xpose.msra.mxu0 0.0
  %158 = vmatpush.xpose.msra.mxu0 0.0
  %159 = vmatpush.xpose.msra.mxu0 0.0
  %160 = vmatpush.xpose.msra.mxu0 %v146
  %161 = vmatpush.xpose.msra.mxu0 %v143
  %162 = vmatpush.xpose.msra.mxu0 %v140
  %163 = vmatpush.xpose.msra.mxu0 %v137
  %164 = vmatmul.f32.gmra.mxu0 %v58
  %v165 = vpop.f32.mrf.mxu0
  %v166 = vadd.f32 0.0, %v165
  %167 = vdwg.mxu0
  %v169 = vsel %vm92, %v128, 0
  %v172 = vsel %vm92, %v129, 0
  %v175 = vsel %vm92, %v130, 0
  %v178 = vsel %vm92, %v131, 0
  %180 = vmatpush.xpose.msra.mxu0 0.0
  %181 = vmatpush.xpose.msra.mxu0 0.0
  %182 = vmatpush.xpose.msra.mxu0 0.0
  %183 = vmatpush.xpose.msra.mxu0 0.0
  %184 = vmatpush.xpose.msra.mxu0 0.0
  %185 = vmatpush.xpose.msra.mxu0 0.0
  %186 = vmatpush.xpose.msra.mxu0 0.0
  %187 = vmatpush.xpose.msra.mxu0 0.0
  %188 = vmatpush.xpose.msra.mxu0 0.0
  %189 = vmatpush.xpose.msra.mxu0 0.0
  %190 = vmatpush.xpose.msra.mxu0 0.0
  %191 = vmatpush.xpose.msra.mxu0 0.0
  %192 = vmatpush.xpose.msra.mxu0 %v178
  %193 = vmatpush.xpose.msra.mxu0 %v175
  %194 = vmatpush.xpose.msra.mxu0 %v172
  %195 = vmatpush.xpose.msra.mxu0 %v169
  %196 = vmatmul.f32.gmra.mxu0 %v94
  %v197 = vpop.f32.mrf.mxu0
  %v198 = vadd.f32 %v166, %v197
  %199 = vdwg.mxu0
  %v200 = vmul.f32 %v126, %v126
  %v201 = vsel %vm92, %v200, 0.0
  %202 = vadd.xlane.f32.xlu0 %v201
  %v203 = vpop.xlane.xlu0 %202
  %v204 = vrsqrt.pop %v203
  %v205 = vmul.f32 %v204, %v203
  %v206 = vmul.f32 %v205, %v204
  %v207 = vmul.f32 0.5, %v206
  %v208 = vsub.f32 1.5, %v207
  %v209 = vmul.f32 %v204, %v208
  %v210 = vmul.f32 %v203, %v209
  %vm211 = vcmp.eq.f32.partialorder %v203, inf
  %v212 = vsel %vm211, %v203, %v210
  %vm213 = vcmp.eq.f32.partialorder %v203, 0.0
  %v214 = vand.u32 %v203, 2147483648
  %v215 = vsel %vm213, %v214, %v212
  %v216 = vmax.f32 %v215, 1e-10
  %v217 = vrcp.pop %v216
  %v218 = vmul.f32 %v216, %v217
  %v219 = vsub.f32 1.0, %v218
  %v220 = vmul.f32 %v217, %v219
  %v221 = vadd.f32 %v217, %v220
  %vm222 = vweird.f32 %v216
  %vm223 = vweird.f32 %v217
  %vm224 = vmor %vm222, %vm223
  %v225 = vsel %vm224, %v217, %v221
  %v226 = vand.u32 2147483647, %v216
  %vm227 = vcmp.eq.f32.partialorder %v226, 8.507059e+37
  %v228 = vand.u32 %v216, 2147483648
  %v229 = vor.u32 1.1754944e-38, %v228
  %v230 = vsel %vm227, %v229, %v225
  %v231 = vmul.f32 %v126, %v230
  %v232 = vmul.f32 %v198, %v198
  %v233 = vsel %vm92, %v232, 0.0
  %234 = vadd.xlane.f32.xlu0 %v233
  %v235 = vpop.xlane.xlu0 %234
  %v236 = vrsqrt.pop %v235
  %v237 = vmul.f32 %v236, %v235
  %v238 = vmul.f32 %v237, %v236
  %v239 = vmul.f32 0.5, %v238
  %v240 = vsub.f32 1.5, %v239
  %v241 = vmul.f32 %v236, %v240
  %v242 = vmul.f32 %v235, %v241
  %vm243 = vcmp.eq.f32.partialorder %v235, inf
  %v244 = vsel %vm243, %v235, %v242
  %vm245 = vcmp.eq.f32.partialorder %v235, 0.0
  %v246 = vand.u32 %v235, 2147483648
  %v247 = vsel %vm245, %v246, %v244
  %v248 = vmax.f32 %v247, 1e-10
  %v249 = vrcp.pop %v248
  %v250 = vmul.f32 %v248, %v249
  %v251 = vsub.f32 1.0, %v250
  %v252 = vmul.f32 %v249, %v251
  %v253 = vadd.f32 %v249, %v252
  %vm254 = vweird.f32 %v248
  %vm255 = vweird.f32 %v249
  %vm256 = vmor %vm254, %vm255
  %v257 = vsel %vm256, %v249, %v253
  %v258 = vand.u32 2147483647, %v248
  %vm259 = vcmp.eq.f32.partialorder %v258, 8.507059e+37
  %v260 = vand.u32 %v248, 2147483648
  %v261 = vor.u32 1.1754944e-38, %v260
  %v262 = vsel %vm259, %v261, %v257
  %v263 = vmul.f32 %v198, %v262
  %v265 = vsel %vm92, %v263, 0
  %v268 = vsel %vm92, %v231, 0
  %270 = vmatpush.xpose.msra.mxu0 0.0
  %271 = vmatpush.xpose.msra.mxu0 0.0
  %272 = vmatpush.xpose.msra.mxu0 0.0
  %273 = vmatpush.xpose.msra.mxu0 0.0
  %274 = vmatpush.xpose.msra.mxu0 0.0
  %275 = vmatpush.xpose.msra.mxu0 0.0
  %276 = vmatpush.xpose.msra.mxu0 0.0
  %277 = vmatpush.xpose.msra.mxu0 0.0
  %278 = vmatpush.xpose.msra.mxu0 0.0
  %279 = vmatpush.xpose.msra.mxu0 0.0
  %280 = vmatpush.xpose.msra.mxu0 0.0
  %281 = vmatpush.xpose.msra.mxu0 0.0
  %282 = vmatpush.xpose.msra.mxu0 0.0
  %283 = vmatpush.xpose.msra.mxu0 0.0
  %284 = vmatpush.xpose.msra.mxu0 0.0
  %285 = vmatpush.xpose.msra.mxu0 %v268
  %286 = vmatmul.f32.gmra.mxu0 %v265
  %v287 = vpop.f32.mrf.mxu0
  %v288 = vadd.f32 0.0, %v287
  %289 = vdwg.mxu0
  %v290 = vmul.f32 %v288, -4.0
  %v291 = vmax.f32 %v290, 0.0
  %v292 = vand.u32 2147483647, %v290
  %v293 = vsub.f32 0.0, %v292
  %v294 = vmul.f32 %v293, 1.442695
  %v295 = vpow.pop %v294
  %v296 = vadd.f32 %v295, 1.0
  %v297 = vlog2.pop %v296
  %v298 = vmul.f32 %v297, 0.6931472
  %v299 = vadd.f32 %v291, %v298
  %v300 = vsub.f32 0.0, %v299
  %v301 = vmax.f32 %v300, -9.2103405
  %v302 = vmin.f32 %v301, -0.000100005
  %v303 = vmul.f32 %v288, 4.0
  %v304 = vmax.f32 %v303, 0.0
  %v305 = vand.u32 2147483647, %v303
  %v306 = vsub.f32 0.0, %v305
  %v307 = vmul.f32 %v306, 1.442695
  %v308 = vpow.pop %v307
  %v309 = vadd.f32 %v308, 1.0
  %v310 = vlog2.pop %v309
  %v311 = vmul.f32 %v310, 0.6931472
  %v312 = vadd.f32 %v304, %v311
  %v313 = vsub.f32 0.0, %v312
  %v314 = vmax.f32 %v313, -9.2103405
  %v315 = vmin.f32 %v314, -0.000100005
  %v316 = vld [vmem:[%s6] sm:$0xff]
  %v317 = vld [vmem:[%s7] sm:$0xff]
  %v318 = vld [vmem:[%s8] sm:$0xff]
  %vm319 = vcmask 64512
  %v321 = vsel %vm319, %v302, 0
  %323 = vmatpush.msra.mxu0 0.0
  %324 = vmatpush.msra.mxu0 0.0
  %325 = vmatpush.msra.mxu0 0.0
  %326 = vmatpush.msra.mxu0 0.0
  %327 = vmatpush.msra.mxu0 0.0
  %328 = vmatpush.msra.mxu0 0.0
  %329 = vmatpush.msra.mxu0 0.0
  %330 = vmatpush.msra.mxu0 0.0
  %331 = vmatpush.msra.mxu0 0.0
  %332 = vmatpush.msra.mxu0 0.0
  %333 = vmatpush.msra.mxu0 0.0
  %334 = vmatpush.msra.mxu0 0.0
  %335 = vmatpush.msra.mxu0 0.0
  %336 = vmatpush.msra.mxu0 0.0
  %337 = vmatpush.msra.mxu0 0.0
  %338 = vmatpush.msra.mxu0 %v317
  %339 = vmatmul.f32.gmra.mxu0 %v321
  %v340 = vpop.f32.mrf.mxu0
  %v341 = vadd.f32 0.0, %v340
  %342 = vdwg.mxu0
  %v343 = vmul.f32 %v341, %v318
  %v344 = vrot.slane %v343, 4
  %v345 = vadd.f32 %v343, %v344
  %v346 = vrot.slane %v345, 2
  %v347 = vadd.f32 %v345, %v346
  %v348 = vrot.slane %v347, 1
  %v349 = vadd.f32 %v347, %v348
  %v351 = vsel %vm319, %v315, 0
  %353 = vmatpush.msra.mxu0 0.0
  %354 = vmatpush.msra.mxu0 0.0
  %355 = vmatpush.msra.mxu0 0.0
  %356 = vmatpush.msra.mxu0 0.0
  %357 = vmatpush.msra.mxu0 0.0
  %358 = vmatpush.msra.mxu0 0.0
  %359 = vmatpush.msra.mxu0 0.0
  %360 = vmatpush.msra.mxu0 0.0
  %361 = vmatpush.msra.mxu0 0.0
  %362 = vmatpush.msra.mxu0 0.0
  %363 = vmatpush.msra.mxu0 0.0
  %364 = vmatpush.msra.mxu0 0.0
  %365 = vmatpush.msra.mxu0 0.0
  %366 = vmatpush.msra.mxu0 0.0
  %367 = vmatpush.msra.mxu0 0.0
  %368 = vmatpush.msra.mxu0 %v317
  %369 = vmatmul.f32.gmra.mxu0 %v351
  %v370 = vpop.f32.mrf.mxu0
  %v371 = vadd.f32 0.0, %v370
  %372 = vdwg.mxu0
  %v373 = vmul.f32 %v371, %v318
  %v374 = vrot.slane %v373, 4
  %v375 = vadd.f32 %v373, %v374
  %v376 = vrot.slane %v375, 2
  %v377 = vadd.f32 %v375, %v376
  %v378 = vrot.slane %v377, 1
  %v379 = vadd.f32 %v377, %v378
  %v380 = vld [vmem:[%s12] sm:$0x1]
  %v381 = vmul.f32 %v379, %v380
  %382 = vmatpush.msra.mxu0 0.0
  %383 = vmatpush.msra.mxu0 0.0
  %384 = vmatpush.msra.mxu0 0.0
  %385 = vmatpush.msra.mxu0 0.0
  %386 = vmatpush.msra.mxu0 0.0
  %387 = vmatpush.msra.mxu0 0.0
  %388 = vmatpush.msra.mxu0 0.0
  %389 = vmatpush.msra.mxu0 0.0
  %390 = vmatpush.msra.mxu0 0.0
  %391 = vmatpush.msra.mxu0 0.0
  %392 = vmatpush.msra.mxu0 0.0
  %393 = vmatpush.msra.mxu0 0.0
  %394 = vmatpush.msra.mxu0 0.0
  %395 = vmatpush.msra.mxu0 0.0
  %396 = vmatpush.msra.mxu0 0.0
  %397 = vmatpush.msra.mxu0 %v316
  %398 = vmatmul.f32.gmra.mxu0 %v351
  %v399 = vpop.f32.mrf.mxu0
  %v400 = vadd.f32 0.0, %v399
  %401 = vdwg.mxu0
  %v402 = vld [vmem:[%s9] sm:$0xff]
  %v403 = vsub.f32 %v402, %v316
  %v404 = vmul.f32 %v400, %v403
  %v405 = vrot.slane %v404, 4
  %v406 = vadd.f32 %v404, %v405
  %v407 = vrot.slane %v406, 2
  %v408 = vadd.f32 %v406, %v407
  %v409 = vrot.slane %v408, 1
  %v410 = vadd.f32 %v408, %v409
  %v411 = vld [vmem:[%s10] sm:$0xff]
  %v412 = vadd.f32 %v411, 1e-06
  %v413 = vlog2.pop %v412
  %v414 = vmul.f32 %v413, 0.6931472
  %v415 = vmul.f32 %v316, %v414
  %v416 = vrot.slane %v415, 4
  %v417 = vadd.f32 %v415, %v416
  %v418 = vrot.slane %v417, 2
  %v419 = vadd.f32 %v417, %v418
  %v420 = vrot.slane %v419, 1
  %v421 = vadd.f32 %v419, %v420
  %v422 = vld [vmem:[%s11] sm:$0xff]
  %v423 = vadd.f32 %v422, 1e-10
  %v424 = vrcp.pop %v423
  %v425 = vmul.f32 %v423, %v424
  %v426 = vsub.f32 1.0, %v425
  %v427 = vmul.f32 %v424, %v426
  %v428 = vadd.f32 %v424, %v427
  %vm429 = vweird.f32 %v423
  %vm430 = vweird.f32 %v424
  %vm431 = vmor %vm429, %vm430
  %v432 = vsel %vm431, %v424, %v428
  %v433 = vand.u32 2147483647, %v423
  %vm434 = vcmp.eq.f32.partialorder %v433, 8.507059e+37
  %v435 = vand.u32 %v423, 2147483648
  %v436 = vor.u32 1.1754944e-38, %v435
  %v437 = vsel %vm434, %v436, %v432
  %v438 = vmul.f32 %v316, %v437
  %v439 = vadd.f32 %v438, 1e-10
  %v440 = vlog2.pop %v439
  %v441 = vmul.f32 %v440, 0.6931472
  %v442 = vmul.f32 %v316, %v441
  %v443 = vrot.slane %v442, 4
  %v444 = vadd.f32 %v442, %v443
  %v445 = vrot.slane %v444, 2
  %v446 = vadd.f32 %v444, %v445
  %v447 = vrot.slane %v446, 1
  %v448 = vadd.f32 %v446, %v447
  %v450 = vrot.slane %v381, 7
  %vm452 = vcmask 1040384
  %v453 = vsel %vm452, %v349, %v450
  %454 = vst [vmem:[%s13] sm:$0x3] %v453
  %v455 = vsel %vm452, %v410, %v421
  %vm456 = vcmask 1041408
  %v457 = vsel %vm456, %v455, %v448
  %458 = vst [vmem:[%s14] sm:$0x7] %v457
  // Predicated region
  $region54: #{_lambda_.4} parent=0 // pred_check
    _
  $region55: #{_lambda_.4} parent=0 // pred_check_branch
    %460 = sbr.rel (0) target = $region57
  $region56: #{_lambda_.4} parent=0 // pred_region
    _
  $region57: #{_lambda_.4} parent=0 // pred_fallthru
    _
  // Predicated region
  $region58: #{_lambda_.4} parent=0 // pred_check
    _
  $region59: #{_lambda_.4} parent=0 // pred_check_branch
    %462 = sbr.rel (0) target = $region61
  $region60: #{_lambda_.4} parent=0 // pred_region
    _
  $region61: #{_lambda_.4} parent=0 // pred_fallthru
    _
  // Predicated region
  $region62: #{_lambda_.4} parent=0 // pred_check
    _
  $region63: #{_lambda_.4} parent=0 // pred_check_branch
    %464 = sbr.rel (0) target = $region65
  $region64: #{_lambda_.4} parent=0 // pred_region
    _
  $region65: #{_lambda_.4} parent=0 // pred_fallthru
    _
  // Predicated region
  $region66: #{_lambda_.4} parent=0 // pred_check
    _
  $region67: #{_lambda_.4} parent=0 // pred_check_branch
    %466 = sbr.rel (0) target = $region69
  $region68: #{_lambda_.4} parent=0 // pred_region
    _
  $region69: #{_lambda_.4} parent=0 // pred_fallthru
    _

</llo_original>
